<compile_context>
chip_gen: v7x
topology: tpu7x:2x2x1
jax: 0.10.0
libtpu: 0.0.40
codegen_flags: <defaults>
</compile_context>

<pallas_src>
import jax
import jax.numpy as jnp
from jax import lax
from jax.experimental import pallas as pl
from jax.experimental.pallas import tpu as pltpu


# --------------------------------------------------------------------------
# Kernel
# --------------------------------------------------------------------------
def _lora_kernel(x_ref, w_ref, b_ref, xa_ref, lb_ref, o_ref, acc_ref):
    k = pl.program_id(2)

    # Base path: x_tile . W_tile^T (contract last axes; W stored (out, in)).
    partial = lax.dot_general(
        x_ref[...], w_ref[...],
        dimension_numbers=(((1,), (1,)), ((), ())),
        preferred_element_type=jnp.float32)

    @pl.when(k == 0)
    def _assign():
        acc_ref[...] = partial          # no zero-init + re-read on first step

    @pl.when(k != 0)
    def _accumulate():
        acc_ref[...] += partial

    @pl.when(k == pl.num_programs(2) - 1)
    def _finalize():
        # LoRA path: (x @ lora_A)_tile . lora_B_tile^T  (rank padded to 128).
        lora = lax.dot_general(
            xa_ref[...], lb_ref[...],
            dimension_numbers=(((1,), (1,)), ((), ())),
            preferred_element_type=jnp.float32)
        o_ref[...] = (acc_ref[...] + b_ref[...] + lora).astype(o_ref.dtype)


# --------------------------------------------------------------------------
# Tiling / VMEM planning helpers
# --------------------------------------------------------------------------
def _round_up(v, m):
    return ((v + m - 1) // m) * m


def _halve(t, align):
    return max(align, ((t // 2) // align) * align)


def _fit_tile(dim, preferred, align):
    """Tile size (multiple of `align`) <= max(preferred, align), minimizing padding."""
    preferred = max(align, (preferred // align) * align)
    if dim <= preferred:
        return _round_up(dim, align)          # single block, minimal padding
    t = preferred
    while t >= align:
        if dim % t == 0:
            return t                          # exact divisor, no padding
        t -= align
    return preferred                          # no aligned divisor; pad dim up


def _vmem_budget_bytes():
    """Generation-aware budget: ~96 MiB on v5e/v6e, ~48 MiB per TC on v7x."""
    try:
        cap = int(pltpu.get_tpu_info().vmem_capacity_bytes)
    except Exception:
        cap = 64 * 2**20                      # conservative (v7x-sized) fallback
    if cap >= 100 * 2**20:                    # v5e / v6e: 128 MiB physical
        return 96 * 2**20
    return max(cap - 16 * 2**20, 24 * 2**20)  # v7x: 64 MiB -> ~48 MiB + headroom


def _vmem_estimate(tm, tn, tk, rp, in_bytes, out_bytes):
    return (2 * (tm * tk + tn * tk + tm * rp + tn * rp) * in_bytes  # dbl-buffered ins
            + 2 * tn * 4                                             # bias
            + 2 * tm * tn * out_bytes                                # output tile
            + tm * tn * 4)                                           # f32 accumulator


def _shrink_to_budget(tm, tn, tk, rp, in_bytes, out_bytes, budget, align_m):
    while _vmem_estimate(tm, tn, tk, rp, in_bytes, out_bytes) > budget:
        if tk > 512:
            tk = _halve(tk, 128)
        elif tn >= tm and tn > 128:
            tn = _halve(tn, 128)
        elif tm > align_m:
            tm = _halve(tm, align_m)
        elif tk > 128:
            tk = _halve(tk, 128)
        elif tn > 128:
            tn = _halve(tn, 128)
        else:
            break
    return tm, tn, tk


def _pad2(a, rows, cols):
    pr, pc = rows - a.shape[0], cols - a.shape[1]
    if pr or pc:
        a = jnp.pad(a, ((0, pr), (0, pc)))
    return a


# --------------------------------------------------------------------------
# Wrapper
# --------------------------------------------------------------------------
def lora_layer_forward(x, weight, bias, lora_A, lora_B, *,
                       tm=512, tn=1024, tk=1024,
                       compute_dtype=jnp.bfloat16):
    """Fused LoRA linear: x @ W.T + b + (x @ lora_A) @ lora_B.T.

    x: (M, K); weight: (N, K) torch nn.Linear layout; bias: (N,) or None;
    lora_A: (K, r); lora_B: (N, r).  Returns (M, N) in x.dtype.
    """
    M, K = x.shape
    N, K2 = weight.shape
    assert K2 == K
    r = lora_A.shape[1]
    assert lora_A.shape == (K, r) and lora_B.shape == (N, r)

    out_dtype = x.dtype
    cd = jnp.dtype(compute_dtype) if compute_dtype is not None else jnp.dtype(x.dtype)
    in_bytes = cd.itemsize
    out_bytes = jnp.dtype(out_dtype).itemsize

    # Hoisted LoRA left factor (computed once, f32, outside the kernel).
    xa = jnp.dot(x.astype(jnp.float32), lora_A.astype(jnp.float32),
                 preferred_element_type=jnp.float32)

    # Lane-dense rank: pad r to a multiple of 128 (extra xa columns are exact
    # zeros, so the extra lora_B columns contribute nothing).
    rp = _round_up(max(r, 1), 128)

    # MXU operands in compute dtype; accumulation stays f32 inside the kernel.
    x_c = x.astype(cd)
    w_c = weight.astype(cd)
    xa_c = xa.astype(cd)
    lb_c = lora_B.astype(cd)
    if bias is None:
        bias = jnp.zeros((N,), jnp.float32)
    b_c = bias.astype(jnp.float32)

    # ---- tile planning against the generation-aware VMEM budget ----
    align_m = 16 if in_bytes <= 2 else 8
    tm = _fit_tile(M, tm, align_m)
    tn = _fit_tile(N, tn, 128)
    tk = _fit_tile(K, tk, 128)
    budget = _vmem_budget_bytes()
    tm, tn, tk = _shrink_to_budget(tm, tn, tk, rp, in_bytes, out_bytes, budget, align_m)

    Mp, Np, Kp = _round_up(M, tm), _round_up(N, tn), _round_up(K, tk)
    x_c = _pad2(x_c, Mp, Kp)
    w_c = _pad2(w_c, Np, Kp)
    xa_c = _pad2(xa_c, Mp, rp)
    lb_c = _pad2(lb_c, Np, rp)
    b2 = _pad2(b_c.reshape(1, N), 1, Np)

    grid = (Mp // tm, Np // tn, Kp // tk)
    gi, gj, gk = grid

    vmem_est = _vmem_estimate(tm, tn, tk, rp, in_bytes, out_bytes)
    vmem_limit = int(min(budget, max(vmem_est + (8 << 20), 24 << 20)))

    cost = pl.CostEstimate(
        flops=2 * Mp * Np * Kp + 2 * Mp * Np * rp,
        transcendentals=0,
        bytes_accessed=int(gj * Mp * Kp * in_bytes      # x re-streamed per j tile
                           + gi * Np * Kp * in_bytes    # W re-streamed per i tile
                           + Mp * rp * in_bytes         # xa fetched once per i
                           + gi * Np * rp * in_bytes    # lora_B per (i, j)
                           + gi * Np * 4                # bias per (i, j)
                           + Mp * Np * out_bytes))      # output written once

    out = pl.pallas_call(
        _lora_kernel,
        out_shape=jax.ShapeDtypeStruct((Mp, Np), out_dtype),
        grid_spec=pltpu.PrefetchScalarGridSpec(
            num_scalar_prefetch=0,
            grid=grid,
            in_specs=[
                pl.BlockSpec((tm, tk), lambda i, j, k: (i, k)),   # x
                pl.BlockSpec((tn, tk), lambda i, j, k: (j, k)),   # W (out, in)
                pl.BlockSpec((1, tn), lambda i, j, k: (0, j)),    # bias
                pl.BlockSpec((tm, rp), lambda i, j, k: (i, 0)),   # xa = x @ lora_A
                pl.BlockSpec((tn, rp), lambda i, j, k: (j, 0)),   # lora_B
            ],
            out_specs=pl.BlockSpec((tm, tn), lambda i, j, k: (i, j)),
            scratch_shapes=[
                pltpu.VMEM((tm, tn), jnp.float32),   # f32 base accumulator
            ]),
        compiler_params=pltpu.CompilerParams(
            dimension_semantics=("parallel", "parallel", "arbitrary"),
            vmem_limit_bytes=vmem_limit),
        cost_estimate=cost,
    )(x_c, w_c, b2, xa_c, lb_c)

    if Mp != M or Np != N:
        out = out[:M, :N]
    return out


def reference_forward(x, weight, bias, lora_A, lora_B):
    return x @ weight.T + bias + x @ lora_A @ lora_B.T


if __name__ == "__main__":
    # NOTE: at this demo size (B=8, H=32) the call is launch-overhead dominated
    # by design; the tiling/bf16 choices pay off at production hidden sizes.
    batch, hidden, rank = 8, 32, 4

    key = jax.random.PRNGKey(0)
    k_x, k_w, k_b, k_lb, k_la = jax.random.split(key, 5)

    x = jax.random.normal(k_x, (batch, hidden), dtype=jnp.float32)

    # base_module = nn.Linear(hidden, hidden): deterministic synthetic params.
    weight = jax.random.normal(k_w, (hidden, hidden), dtype=jnp.float32) * 0.1
    bias = jax.random.normal(k_b, (hidden,), dtype=jnp.float32) * 0.1

    # Faithful to LoRALayerWrapper.__init__: lora_A = zeros, lora_B = randn.
    lora_A = jnp.zeros((hidden, rank), dtype=jnp.float32)
    lora_B = jax.random.normal(k_lb, (hidden, rank), dtype=jnp.float32)

    # 1) f32 compute path: exact check against the reference.
    out = lora_layer_forward(x, weight, bias, lora_A, lora_B,
                             compute_dtype=jnp.float32)
    jax.block_until_ready(out)
    ref = reference_forward(x, weight, bias, lora_A, lora_B)
    assert out.shape == ref.shape
    assert jnp.allclose(out, ref, atol=1e-5, rtol=1e-5), "mismatch (f32, zero A)"

    # 2) Default bf16 compute path with nonzero lora_A (f32 accumulation; loose tol).
    lora_A2 = jax.random.normal(k_la, (hidden, rank), dtype=jnp.float32) * 0.05
    out2 = lora_layer_forward(x, weight, bias, lora_A2, lora_B)
    jax.block_until_ready(out2)
    ref2 = reference_forward(x, weight, bias, lora_A2, lora_B)
    assert out2.shape == ref2.shape
    assert jnp.allclose(out2, ref2, atol=5e-2, rtol=5e-2), "mismatch (bf16, nonzero A)"

    print("KERNEL_OK")
</pallas_src>

<mosaic_0001>
module attributes {stable_mosaic.version = 11 : i64} {
  func.func @_lora_kernel(%arg0: i32, %arg1: i32, %arg2: i32, %arg3: memref<8x128xf32, #tpu.memory_space<vmem>>, %arg4: memref<128x128xf32, #tpu.memory_space<vmem>>, %arg5: memref<1x128xf32, #tpu.memory_space<vmem>>, %arg6: memref<8x128xf32, #tpu.memory_space<vmem>>, %arg7: memref<128x128xf32, #tpu.memory_space<vmem>>, %arg8: memref<8x128xf32, #tpu.memory_space<vmem>>, %arg9: memref<8x128xf32, #tpu.memory_space<vmem>>) attributes {dimension_semantics = [#tpu.dimension_semantics<parallel>, #tpu.dimension_semantics<parallel>, #tpu.dimension_semantics<arbitrary>], iteration_bounds = array<i64: 1, 1, 1>, scalar_prefetch = 0 : i64, scratch_operands = 1 : i64, tpu.core_type = #tpu.core_type<tc>, window_params = [{transform_indices = @transform_0, window_bounds = array<i64: 8, 128>}, {transform_indices = @transform_1, window_bounds = array<i64: 128, 128>}, {transform_indices = @transform_2, window_bounds = array<i64: 1, 128>}, {transform_indices = @transform_3, window_bounds = array<i64: 8, 128>}, {transform_indices = @transform_4, window_bounds = array<i64: 128, 128>}, {transform_indices = @transform_5, window_bounds = array<i64: 8, 128>}]} {
    %c0 = arith.constant 0 : index
    %c0_0 = arith.constant 0 : index
    %0 = vector.load %arg3[%c0, %c0_0] : memref<8x128xf32, #tpu.memory_space<vmem>>, vector<8x128xf32>
    %c0_1 = arith.constant 0 : index
    %c0_2 = arith.constant 0 : index
    %1 = vector.load %arg4[%c0_1, %c0_2] : memref<128x128xf32, #tpu.memory_space<vmem>>, vector<128x128xf32>
    %cst = arith.constant dense<0.000000e+00> : vector<8x128xf32>
    %2 = tpu.matmul %0, %1, %cst {dimension_numbers = #tpu.dot_dimension_numbers<[1], [1], [0], [0], [0, 0, 1, 0], [], []>} : vector<8x128xf32>, vector<128x128xf32>, vector<8x128xf32> -> vector<8x128xf32>
    %c0_i32 = arith.constant 0 : i32
    %3 = arith.cmpi eq, %arg2, %c0_i32 : i32
    %4 = arith.extui %3 : i1 to i32
    %c0_i32_3 = arith.constant 0 : i32
    %5 = arith.cmpi ne, %4, %c0_i32_3 : i32
    scf.if %5 {
      %c0_8 = arith.constant 0 : index
      %c0_9 = arith.constant 0 : index
      %12 = vector.load %arg9[%c0_8, %c0_9] : memref<8x128xf32, #tpu.memory_space<vmem>>, vector<8x128xf32>
      tpu.vector_store %arg9[%c0_8, %c0_9], %2 {strides = array<i32>} : memref<8x128xf32, #tpu.memory_space<vmem>>, vector<8x128xf32>,
    } else {
    }
    %c0_i32_4 = arith.constant 0 : i32
    %6 = arith.cmpi ne, %arg2, %c0_i32_4 : i32
    %7 = arith.extui %6 : i1 to i32
    %c0_i32_5 = arith.constant 0 : i32
    %8 = arith.cmpi ne, %7, %c0_i32_5 : i32
    scf.if %8 {
      %c0_8 = arith.constant 0 : index
      %c0_9 = arith.constant 0 : index
      %12 = vector.load %arg9[%c0_8, %c0_9] : memref<8x128xf32, #tpu.memory_space<vmem>>, vector<8x128xf32>
      %13 = arith.addf %12, %2 : vector<8x128xf32>
      %c0_10 = arith.constant 0 : index
      %c0_11 = arith.constant 0 : index
      %14 = vector.load %arg9[%c0_10, %c0_11] : memref<8x128xf32, #tpu.memory_space<vmem>>, vector<8x128xf32>
      tpu.vector_store %arg9[%c0_10, %c0_11], %13 {strides = array<i32>} : memref<8x128xf32, #tpu.memory_space<vmem>>, vector<8x128xf32>,
    } else {
    }
    %c0_i32_6 = arith.constant 0 : i32
    %9 = arith.cmpi eq, %arg2, %c0_i32_6 : i32
    %10 = arith.extui %9 : i1 to i32
    %c0_i32_7 = arith.constant 0 : i32
    %11 = arith.cmpi ne, %10, %c0_i32_7 : i32
    scf.if %11 {
      %c0_8 = arith.constant 0 : index
      %c0_9 = arith.constant 0 : index
      %12 = vector.load %arg6[%c0_8, %c0_9] : memref<8x128xf32, #tpu.memory_space<vmem>>, vector<8x128xf32>
      %c0_10 = arith.constant 0 : index
      %c0_11 = arith.constant 0 : index
      %13 = vector.load %arg7[%c0_10, %c0_11] : memref<128x128xf32, #tpu.memory_space<vmem>>, vector<128x128xf32>
      %cst_12 = arith.constant dense<0.000000e+00> : vector<8x128xf32>
      %14 = tpu.matmul %12, %13, %cst_12 {dimension_numbers = #tpu.dot_dimension_numbers<[1], [1], [0], [0], [0, 0, 1, 0], [], []>} : vector<8x128xf32>, vector<128x128xf32>, vector<8x128xf32> -> vector<8x128xf32>
      %c0_13 = arith.constant 0 : index
      %c0_14 = arith.constant 0 : index
      %15 = vector.load %arg9[%c0_13, %c0_14] : memref<8x128xf32, #tpu.memory_space<vmem>>, vector<8x128xf32>
      %c0_15 = arith.constant 0 : index
      %c0_16 = arith.constant 0 : index
      %16 = vector.load %arg5[%c0_15, %c0_16] : memref<1x128xf32, #tpu.memory_space<vmem>>, vector<1x128xf32>
      %17 = vector.broadcast %16 : vector<1x128xf32> to vector<8x128xf32>
      %18 = arith.addf %15, %17 : vector<8x128xf32>
      %19 = arith.addf %18, %14 : vector<8x128xf32>
      %c0_17 = arith.constant 0 : index
      %c0_18 = arith.constant 0 : index
      %20 = vector.load %arg8[%c0_17, %c0_18] : memref<8x128xf32, #tpu.memory_space<vmem>>, vector<8x128xf32>
      tpu.vector_store %arg8[%c0_17, %c0_18], %19 {strides = array<i32>} : memref<8x128xf32, #tpu.memory_space<vmem>>, vector<8x128xf32>,
    } else {
    }
    return
  }
  func.func @transform_0(%arg0: i32, %arg1: i32, %arg2: i32) -> (i32, i32) {
    %c0_i32 = arith.constant 0 : i32
    return %arg0, %arg2 : i32, i32
  }
  func.func @transform_1(%arg0: i32, %arg1: i32, %arg2: i32) -> (i32, i32) {
    %c0_i32 = arith.constant 0 : i32
    return %arg1, %arg2 : i32, i32
  }
  func.func @transform_2(%arg0: i32, %arg1: i32, %arg2: i32) -> (i32, i32) {
    %c0_i32 = arith.constant 0 : i32
    %c0_i32_0 = arith.constant 0 : i32
    return %c0_i32, %arg1 : i32, i32
  }
  func.func @transform_3(%arg0: i32, %arg1: i32, %arg2: i32) -> (i32, i32) {
    %c0_i32 = arith.constant 0 : i32
    %c0_i32_0 = arith.constant 0 : i32
    return %arg0, %c0_i32 : i32, i32
  }
  func.func @transform_4(%arg0: i32, %arg1: i32, %arg2: i32) -> (i32, i32) {
    %c0_i32 = arith.constant 0 : i32
    %c0_i32_0 = arith.constant 0 : i32
    return %arg1, %c0_i32 : i32, i32
  }
  func.func @transform_5(%arg0: i32, %arg1: i32, %arg2: i32) -> (i32, i32) {
    %c0_i32 = arith.constant 0 : i32
    return %arg0, %arg1 : i32, i32
  }
}

</mosaic_0001>

<llo_original>
// kernel: tpu_custom_call.1
$region0: #{tpu_custom_call.1}
  #allocation0 [shape = 'u32[]', space=smem, size = 0x4, offset = 0x4, fixed_abs, tag = 'smem constant byte address 0x4 - core index']
  #allocation1 [shape = 'u32[144,128]{1,0:T(1,128)}', space=vmem, size = 0x12000, scoped, tag = 'internal scratch']
  #allocation2 [shape = 'f32[8,128]{1,0:T(8,128)}', space=vmem, size = 0x1000, scoped, tag = 'scratch operand']
  %s0 = inlined_call_operand.hbm [shape: f32[8,128], index: 0, kind: input, shape index: {}]
  %s1 = inlined_call_operand.hbm [shape: f32[128,128], index: 1, kind: input, shape index: {}]
  %s2 = inlined_call_operand.vmem [shape: f32[1,128], index: 2, kind: input, shape index: {}]
  %s3 = inlined_call_operand.vmem [shape: f32[8,128], index: 3, kind: input, shape index: {}]
  %s4 = inlined_call_operand.hbm [shape: f32[128,128], index: 4, kind: input, shape index: {}]
  %s5 = inlined_call_operand.hbm [shape: f32[8,128], index: 5, kind: output, shape index: {}]
  %s6 = sld [smem:[#allocation0]]
  $region54: #{tpu_custom_call.1} parent=0
    _
  %s8 = ssub.s32 1, %s6
  %s9 = scalar_select 0, %s8, %s6
  $region1: #{tpu_custom_call.1} parent=0
    #allocation3 [shape = 'u8[4096]{0}', space=vmem, size = 0x1000, scoped, tag = 'input window, operand 0, single buffered']
    #allocation4 [shape = 's32[1]{0}', space=sflag, size = 0x4, scoped, tag = 'scoped memory for tpu_custom_call.1']
    #allocation5 [shape = 's32[1]{0}', space=sflag, size = 0x4, scoped, tag = 'scoped memory for tpu_custom_call.1']
    #allocation6 [shape = 'u8[65536]{0}', space=vmem, size = 0x10000, scoped, tag = 'input window, operand 1, single buffered']
    #allocation7 [shape = 's32[1]{0}', space=sflag, size = 0x4, scoped, tag = 'scoped memory for tpu_custom_call.1']
    #allocation8 [shape = 'u8[65536]{0}', space=vmem, size = 0x10000, scoped, tag = 'input window, operand 4, single buffered']
    #allocation9 [shape = 'u8[4096]{0}', space=vmem, size = 0x1000, scoped, tag = 'output window, operand 0, single buffered']
    %10 = vsyncpa [#allocation4], 0
    %11 = vsyncpa [#allocation7], 0
    %12 = vsyncpa [#allocation5], 0
    // Predicated region
    $region2: #{tpu_custom_call.1} parent=1 // pred_check
      _
    $region3: #{tpu_custom_call.1} parent=1 // pred_check_branch
      %14 = sbr.rel (0) target = $region5
    $region4: #{tpu_custom_call.1} parent=1 // pred_region
      %s16 = ssub.s32 128, 128
      %17 = vsyncadd [#allocation4], %s16
      %s19 = sshll.u32 [#allocation3], 4
      %s20 = int_to_ptr.vmem [resolvable:$true] %s19
      %22 = dma.hbm_to_vmem [thread:$0]  %s0, 128, %s20, [#allocation4]
    $region5: #{tpu_custom_call.1} parent=1 // pred_fallthru
      _
    // Predicated region
    $region6: #{tpu_custom_call.1} parent=1 // pred_check
      _
    $region7: #{tpu_custom_call.1} parent=1 // pred_check_branch
      %24 = sbr.rel (0) target = $region9
    $region8: #{tpu_custom_call.1} parent=1 // pred_region
      %s26 = ssub.s32 2048, 2048
      %27 = vsyncadd [#allocation7], %s26
      %s28 = sshll.u32 [#allocation6], 4
      %s29 = int_to_ptr.vmem [resolvable:$true] %s28
      %34 = dma.hbm_to_vmem [thread:$0]  %s1, 2048, %s29, [#allocation7], 128, 128, 8
    $region9: #{tpu_custom_call.1} parent=1 // pred_fallthru
      _
    // Predicated region
    $region10: #{tpu_custom_call.1} parent=1 // pred_check
      _
    $region11: #{tpu_custom_call.1} parent=1 // pred_check_branch
      %36 = sbr.rel (0) target = $region13
    $region12: #{tpu_custom_call.1} parent=1 // pred_region
      _
    $region13: #{tpu_custom_call.1} parent=1 // pred_fallthru
      _
    // Predicated region
    $region14: #{tpu_custom_call.1} parent=1 // pred_check
      _
    $region15: #{tpu_custom_call.1} parent=1 // pred_check_branch
      %38 = sbr.rel (0) target = $region17
    $region16: #{tpu_custom_call.1} parent=1 // pred_region
      _
    $region17: #{tpu_custom_call.1} parent=1 // pred_fallthru
      _
    // Predicated region
    $region18: #{tpu_custom_call.1} parent=1 // pred_check
      _
    $region19: #{tpu_custom_call.1} parent=1 // pred_check_branch
      %40 = sbr.rel (0) target = $region21
    $region20: #{tpu_custom_call.1} parent=1 // pred_region
      %s42 = ssub.s32 2048, 2048
      %43 = vsyncadd [#allocation7], %s42
      %s44 = sshll.u32 [#allocation8], 4
      %s45 = int_to_ptr.vmem [resolvable:$true] %s44
      %50 = dma.hbm_to_vmem [thread:$0]  %s4, 2048, %s45, [#allocation7], 128, 128, 8
    $region21: #{tpu_custom_call.1} parent=1 // pred_fallthru
      _
    // Predicated region
    $region22: #{tpu_custom_call.1} parent=1 // pred_check
      _
    $region23: #{tpu_custom_call.1} parent=1 // pred_check_branch
      %52 = sbr.rel (0) target = $region25
    $region24: #{tpu_custom_call.1} parent=1 // pred_region
      %53 = dma.done [#allocation4], 128
    $region25: #{tpu_custom_call.1} parent=1 // pred_fallthru
      _
    // Predicated region
    $region26: #{tpu_custom_call.1} parent=1 // pred_check
      _
    $region27: #{tpu_custom_call.1} parent=1 // pred_check_branch
      %55 = sbr.rel (0) target = $region29
    $region28: #{tpu_custom_call.1} parent=1 // pred_region
      %56 = dma.done [#allocation7], 2048
    $region29: #{tpu_custom_call.1} parent=1 // pred_fallthru
      _
    // Predicated region
    $region30: #{tpu_custom_call.1} parent=1 // pred_check
      _
    $region31: #{tpu_custom_call.1} parent=1 // pred_check_branch
      %58 = sbr.rel (0) target = $region33
    $region32: #{tpu_custom_call.1} parent=1 // pred_region
      %59 = dma.done [#allocation7], 2048
    $region33: #{tpu_custom_call.1} parent=1 // pred_fallthru
      _
    %v60 = vld [vmem:[#allocation3] sm:$0xff]
    %v61 = vld [vmem:[#allocation6] sm:$0xff]
    %v62 = vld [vmem:[#allocation6 + $0x8] sm:$0xff]
    %v63 = vld [vmem:[#allocation6 + $0x10] sm:$0xff]
    %v64 = vld [vmem:[#allocation6 + $0x18] sm:$0xff]
    %v65 = vld [vmem:[#allocation6 + $0x20] sm:$0xff]
    %v66 = vld [vmem:[#allocation6 + $0x28] sm:$0xff]
    %v67 = vld [vmem:[#allocation6 + $0x30] sm:$0xff]
    %v68 = vld [vmem:[#allocation6 + $0x38] sm:$0xff]
    %v69 = vld [vmem:[#allocation6 + $0x40] sm:$0xff]
    %v70 = vld [vmem:[#allocation6 + $0x48] sm:$0xff]
    %v71 = vld [vmem:[#allocation6 + $0x50] sm:$0xff]
    %v72 = vld [vmem:[#allocation6 + $0x58] sm:$0xff]
    %v73 = vld [vmem:[#allocation6 + $0x60] sm:$0xff]
    %v74 = vld [vmem:[#allocation6 + $0x68] sm:$0xff]
    %v75 = vld [vmem:[#allocation6 + $0x70] sm:$0xff]
    %v76 = vld [vmem:[#allocation6 + $0x78] sm:$0xff]
    %77 = vmatprep.subr.mxu0 0.0
    %78 = vmatpush1.xpose.msra.mxu0 %v61
    %79 = vmatprep.subr.mxu0 0.0
    %80 = vmatpush1.xpose.msra.mxu0 %v62
    %81 = vmatprep.subr.mxu0 0.0
    %82 = vmatpush1.xpose.msra.mxu0 %v63
    %83 = vmatprep.subr.mxu0 0.0
    %84 = vmatpush1.xpose.msra.mxu0 %v64
    %85 = vmatprep.subr.mxu0 0.0
    %86 = vmatpush1.xpose.msra.mxu0 %v65
    %87 = vmatprep.subr.mxu0 0.0
    %88 = vmatpush1.xpose.msra.mxu0 %v66
    %89 = vmatprep.subr.mxu0 0.0
    %90 = vmatpush1.xpose.msra.mxu0 %v67
    %91 = vmatprep.subr.mxu0 0.0
    %92 = vmatpush1.xpose.msra.mxu0 %v68
    %93 = vmatprep.subr.mxu0 0.0
    %94 = vmatpush1.xpose.msra.mxu0 %v69
    %95 = vmatprep.subr.mxu0 0.0
    %96 = vmatpush1.xpose.msra.mxu0 %v70
    %97 = vmatprep.subr.mxu0 0.0
    %98 = vmatpush1.xpose.msra.mxu0 %v71
    %99 = vmatprep.subr.mxu0 0.0
    %100 = vmatpush1.xpose.msra.mxu0 %v72
    %101 = vmatprep.subr.mxu0 0.0
    %102 = vmatpush1.xpose.msra.mxu0 %v73
    %103 = vmatprep.subr.mxu0 0.0
    %104 = vmatpush1.xpose.msra.mxu0 %v74
    %105 = vmatprep.subr.mxu0 0.0
    %106 = vmatpush1.xpose.msra.mxu0 %v75
    %107 = vmatprep.subr.mxu0 0.0
    %108 = vmatpush1.xpose.msra.mxu0 %v76
    %109 = vmatprep.subr.mxu0 0.0
    %110 = vmatpush1.xpose.msra.mxu0 0.0
    %111 = vmatprep.subr.mxu0 0.0
    %112 = vmatpush1.xpose.msra.mxu0 0.0
    %113 = vmatprep.subr.mxu0 0.0
    %114 = vmatpush1.xpose.msra.mxu0 0.0
    %115 = vmatprep.subr.mxu0 0.0
    %116 = vmatpush1.xpose.msra.mxu0 0.0
    %117 = vmatprep.subr.mxu0 0.0
    %118 = vmatpush1.xpose.msra.mxu0 0.0
    %119 = vmatprep.subr.mxu0 0.0
    %120 = vmatpush1.xpose.msra.mxu0 0.0
    %121 = vmatprep.subr.mxu0 0.0
    %122 = vmatpush1.xpose.msra.mxu0 0.0
    %123 = vmatprep.subr.mxu0 0.0
    %124 = vmatpush1.xpose.msra.mxu0 0.0
    %125 = vmatprep.subr.mxu0 0.0
    %126 = vmatpush1.xpose.msra.mxu0 0.0
    %127 = vmatprep.subr.mxu0 0.0
    %128 = vmatpush1.xpose.msra.mxu0 0.0
    %129 = vmatprep.subr.mxu0 0.0
    %130 = vmatpush1.xpose.msra.mxu0 0.0
    %131 = vmatprep.subr.mxu0 0.0
    %132 = vmatpush1.xpose.msra.mxu0 0.0
    %133 = vmatprep.subr.mxu0 0.0
    %134 = vmatpush1.xpose.msra.mxu0 0.0
    %135 = vmatprep.subr.mxu0 0.0
    %136 = vmatpush1.xpose.msra.mxu0 0.0
    %137 = vmatprep.subr.mxu0 0.0
    %138 = vmatpush1.xpose.msra.mxu0 0.0
    %139 = vmatprep.subr.mxu0 0.0
    %140 = vmatpush1.xpose.msra.mxu0 0.0
    %141 = vmatprep.mubr.f32.mxu0 0.0
    %142 = vmatmul.mubr.f32.gmra.mrb[0].mxu0 %v60
    %v143 = vpop.f32.mrb[0].mxu0
    %v144 = vadd.f32 0.0, %v143
    %v145 = vpop.f32.mrb[0].mxu0
    %146 = vdwg.mxu0
    %p147 = scmp.eq.s32.totalorder 0, 0
    // Predicated region
    $region34: #{tpu_custom_call.1} parent=1 // pred_check
      %p148 = pneg %p147
    $region35: #{tpu_custom_call.1} parent=1 // pred_check_branch
      %150 = sbr.rel (%p148) target = $region37
    $region36: #{tpu_custom_call.1} parent=1 // pred_region
      %151 = vst [vmem:[#allocation2] sm:$0xff] %v144
    $region37: #{tpu_custom_call.1} parent=1 // pred_fallthru
      _
    %p152 = scmp.ne.s32.totalorder 0, 0
    // Predicated region
    $region38: #{tpu_custom_call.1} parent=1 // pred_check
      %p153 = pneg %p152
    $region39: #{tpu_custom_call.1} parent=1 // pred_check_branch
      %155 = sbr.rel (%p153) target = $region41
    $region40: #{tpu_custom_call.1} parent=1 // pred_region
      %v156 = vld [vmem:[#allocation2] sm:$0xff]
      %v157 = vadd.f32 %v156, %v144
      %158 = vst [vmem:[#allocation2] sm:$0xff] %v157
    $region41: #{tpu_custom_call.1} parent=1 // pred_fallthru
      _
    // Predicated region
    $region42: #{tpu_custom_call.1} parent=1 // pred_check
      %p159 = pneg %p147
    $region43: #{tpu_custom_call.1} parent=1 // pred_check_branch
      %161 = sbr.rel (%p159) target = $region45
    $region44: #{tpu_custom_call.1} parent=1 // pred_region
      %v162 = vld [vmem:[%s3] sm:$0xff]
      %v163 = vld [vmem:[#allocation8] sm:$0xff]
      %v164 = vld [vmem:[#allocation8 + $0x8] sm:$0xff]
      %v165 = vld [vmem:[#allocation8 + $0x10] sm:$0xff]
      %v166 = vld [vmem:[#allocation8 + $0x18] sm:$0xff]
      %v167 = vld [vmem:[#allocation8 + $0x20] sm:$0xff]
      %v168 = vld [vmem:[#allocation8 + $0x28] sm:$0xff]
      %v169 = vld [vmem:[#allocation8 + $0x30] sm:$0xff]
      %v170 = vld [vmem:[#allocation8 + $0x38] sm:$0xff]
      %v171 = vld [vmem:[#allocation8 + $0x40] sm:$0xff]
      %v172 = vld [vmem:[#allocation8 + $0x48] sm:$0xff]
      %v173 = vld [vmem:[#allocation8 + $0x50] sm:$0xff]
      %v174 = vld [vmem:[#allocation8 + $0x58] sm:$0xff]
      %v175 = vld [vmem:[#allocation8 + $0x60] sm:$0xff]
      %v176 = vld [vmem:[#allocation8 + $0x68] sm:$0xff]
      %v177 = vld [vmem:[#allocation8 + $0x70] sm:$0xff]
      %v178 = vld [vmem:[#allocation8 + $0x78] sm:$0xff]
      %179 = vmatprep.subr.mxu0 0.0
      %180 = vmatpush1.xpose.msra.mxu0 %v163
      %181 = vmatprep.subr.mxu0 0.0
      %182 = vmatpush1.xpose.msra.mxu0 %v164
      %183 = vmatprep.subr.mxu0 0.0
      %184 = vmatpush1.xpose.msra.mxu0 %v165
      %185 = vmatprep.subr.mxu0 0.0
      %186 = vmatpush1.xpose.msra.mxu0 %v166
      %187 = vmatprep.subr.mxu0 0.0
      %188 = vmatpush1.xpose.msra.mxu0 %v167
      %189 = vmatprep.subr.mxu0 0.0
      %190 = vmatpush1.xpose.msra.mxu0 %v168
      %191 = vmatprep.subr.mxu0 0.0
      %192 = vmatpush1.xpose.msra.mxu0 %v169
      %193 = vmatprep.subr.mxu0 0.0
      %194 = vmatpush1.xpose.msra.mxu0 %v170
      %195 = vmatprep.subr.mxu0 0.0
      %196 = vmatpush1.xpose.msra.mxu0 %v171
      %197 = vmatprep.subr.mxu0 0.0
      %198 = vmatpush1.xpose.msra.mxu0 %v172
      %199 = vmatprep.subr.mxu0 0.0
      %200 = vmatpush1.xpose.msra.mxu0 %v173
      %201 = vmatprep.subr.mxu0 0.0
      %202 = vmatpush1.xpose.msra.mxu0 %v174
      %203 = vmatprep.subr.mxu0 0.0
      %204 = vmatpush1.xpose.msra.mxu0 %v175
      %205 = vmatprep.subr.mxu0 0.0
      %206 = vmatpush1.xpose.msra.mxu0 %v176
      %207 = vmatprep.subr.mxu0 0.0
      %208 = vmatpush1.xpose.msra.mxu0 %v177
      %209 = vmatprep.subr.mxu0 0.0
      %210 = vmatpush1.xpose.msra.mxu0 %v178
      %211 = vmatprep.subr.mxu0 0.0
      %212 = vmatpush1.xpose.msra.mxu0 0.0
      %213 = vmatprep.subr.mxu0 0.0
      %214 = vmatpush1.xpose.msra.mxu0 0.0
      %215 = vmatprep.subr.mxu0 0.0
      %216 = vmatpush1.xpose.msra.mxu0 0.0
      %217 = vmatprep.subr.mxu0 0.0
      %218 = vmatpush1.xpose.msra.mxu0 0.0
      %219 = vmatprep.subr.mxu0 0.0
      %220 = vmatpush1.xpose.msra.mxu0 0.0
      %221 = vmatprep.subr.mxu0 0.0
      %222 = vmatpush1.xpose.msra.mxu0 0.0
      %223 = vmatprep.subr.mxu0 0.0
      %224 = vmatpush1.xpose.msra.mxu0 0.0
      %225 = vmatprep.subr.mxu0 0.0
      %226 = vmatpush1.xpose.msra.mxu0 0.0
      %227 = vmatprep.subr.mxu0 0.0
      %228 = vmatpush1.xpose.msra.mxu0 0.0
      %229 = vmatprep.subr.mxu0 0.0
      %230 = vmatpush1.xpose.msra.mxu0 0.0
      %231 = vmatprep.subr.mxu0 0.0
      %232 = vmatpush1.xpose.msra.mxu0 0.0
      %233 = vmatprep.subr.mxu0 0.0
      %234 = vmatpush1.xpose.msra.mxu0 0.0
      %235 = vmatprep.subr.mxu0 0.0
      %236 = vmatpush1.xpose.msra.mxu0 0.0
      %237 = vmatprep.subr.mxu0 0.0
      %238 = vmatpush1.xpose.msra.mxu0 0.0
      %239 = vmatprep.subr.mxu0 0.0
      %240 = vmatpush1.xpose.msra.mxu0 0.0
      %241 = vmatprep.subr.mxu0 0.0
      %242 = vmatpush1.xpose.msra.mxu0 0.0
      %243 = vmatprep.mubr.f32.mxu0 0.0
      %244 = vmatmul.mubr.f32.gmra.mrb[0].mxu0 %v162
      %v245 = vpop.f32.mrb[0].mxu0
      %v246 = vadd.f32 0.0, %v245
      %v247 = vpop.f32.mrb[0].mxu0
      %248 = vdwg.mxu0
      %v249 = vld [vmem:[#allocation2] sm:$0xff]
      %v250 = vld [vmem:[%s2] sm:$0x1]
      %v252 = vlaneseq
      %v253 = vshrl.u32 %v252, 7
      %v254 = vsub.s32 0, %v253
      %v255 = vrot.slane %v250, %v254
      %v257 = vadd.f32 %v249, %v255
      %v258 = vadd.f32 %v257, %v246
      %259 = vst [vmem:[#allocation9] sm:$0xff] %v258
    $region45: #{tpu_custom_call.1} parent=1 // pred_fallthru
      _
    // Predicated region
    $region46: #{tpu_custom_call.1} parent=1 // pred_check
      _
    $region47: #{tpu_custom_call.1} parent=1 // pred_check_branch
      %261 = sbr.rel (0) target = $region49
    $region48: #{tpu_custom_call.1} parent=1 // pred_region
      %s263 = ssub.s32 128, 128
      %264 = vsyncadd [#allocation5], %s263
      %s266 = sshll.u32 [#allocation9], 4
      %s267 = int_to_ptr.vmem [resolvable:$true] %s266
      %269 = dma.vmem_to_hbm [thread:$0]  %s267, 128, %s5, [#allocation5]
    $region49: #{tpu_custom_call.1} parent=1 // pred_fallthru
      _
    // Predicated region
    $region50: #{tpu_custom_call.1} parent=1 // pred_check
      _
    $region51: #{tpu_custom_call.1} parent=1 // pred_check_branch
      %271 = sbr.rel (0) target = $region53
    $region52: #{tpu_custom_call.1} parent=1 // pred_region
      %272 = dma.done [#allocation5], 128
    $region53: #{tpu_custom_call.1} parent=1 // pred_fallthru
      _
    %273 = vsyncpa [#allocation4], 1
    %274 = vsyncpa [#allocation7], 1
    %275 = vsyncpa [#allocation5], 1

</llo_original>
